<compile_context>
chip_gen: v5e
topology: v5e:2x2
jax: 0.10.0
libtpu: 0.0.40
codegen_flags: <defaults>
</compile_context>

<pallas_src>
import jax
import jax.numpy as jnp
from jax.experimental import pallas as pl
from jax.experimental.pallas import tpu as pltpu


_LANES = 512      # lane-dense last dim (multiple of 128)
_SUBLANES = 8     # f32 vreg sublane count


def _round_up(x: int, m: int) -> int:
    return ((x + m - 1) // m) * m


def _sum_kernel(x_ref, o_ref):
    # x_ref : (TR, 512) f32 tile of the flattened (zero-padded) input
    # o_ref : (8, 512)  f32 partial-sum accumulator (resident in VMEM across
    #         the whole grid because its index_map is constant)
    @pl.when(pl.program_id(0) == 0)
    def _():
        o_ref[...] = jnp.zeros_like(o_ref)

    x = x_ref[...]                                   # (TR, 512) f32
    tr = x.shape[0]
    # Group rows as (TR//8, 8, 512); summing axis 0 is element-wise vreg adds
    # (VPU only), no cross-sublane reduction inside the hot loop.
    o_ref[...] += jnp.sum(x.reshape(tr // _SUBLANES, _SUBLANES, _LANES), axis=0)


def reduce_sum_dtype_float(a: jax.Array, *, max_rows_per_step: int = 2048) -> jax.Array:
    """torch.sum(a, dtype=torch.float32) for a rank-3 input -> float32 scalar."""
    assert a.ndim == 3
    # TODO(synk): TPU has no native float64; the float64 input is computed in
    # float32 (torch.sum(dtype=torch.float32) casts to f32 before summing anyway).
    x = a.astype(jnp.float32).reshape(-1)
    n = x.shape[0]

    rows = pl.cdiv(n, _LANES)
    tr = min(_round_up(max_rows_per_step, _SUBLANES), _round_up(rows, _SUBLANES))
    rows_p = _round_up(rows, tr)
    total = rows_p * _LANES
    if total > n:
        x = jnp.pad(x, (0, total - n))               # zero padding is sum-neutral
    x2 = x.reshape(rows_p, _LANES)
    grid = (rows_p // tr,)

    partial = pl.pallas_call(
        _sum_kernel,
        out_shape=jax.ShapeDtypeStruct((_SUBLANES, _LANES), jnp.float32),
        grid_spec=pltpu.PrefetchScalarGridSpec(
            num_scalar_prefetch=0,
            grid=grid,
            in_specs=[pl.BlockSpec((tr, _LANES), lambda r: (r, 0))],
            out_specs=pl.BlockSpec((_SUBLANES, _LANES), lambda r: (0, 0)),
        ),
        compiler_params=pltpu.CompilerParams(
            dimension_semantics=("arbitrary",),       # grid axis is the reduction
            vmem_limit_bytes=32 * 1024 * 1024,        # safe default on v5e/v6e/v7x
        ),
        cost_estimate=pl.CostEstimate(
            flops=total,
            transcendentals=0,
            bytes_accessed=4 * total + 4 * _SUBLANES * _LANES,
        ),
    )(x2)

    # Tiny (8, 512) finish outside the kernel: one cheap XLA reduce to a scalar.
    return jnp.sum(partial)


if __name__ == "__main__":
    key = jax.random.PRNGKey(0)
    k1, k2 = jax.random.split(key)

    # annotate_args: rank-3, torch.float64 input (built as f32: no f64 on TPU).
    x1 = jax.random.normal(k1, (3, 4, 5), dtype=jnp.float32)
    y1 = jax.block_until_ready(reduce_sum_dtype_float(x1))
    ref1 = jnp.sum(x1.astype(jnp.float32))
    assert y1.shape == ref1.shape == ()
    assert y1.dtype == jnp.float32
    assert jnp.allclose(y1, ref1, rtol=1e-5, atol=1e-3), (y1, ref1)

    # Second case: exercises zero-padding + multi-step grid accumulation.
    x2 = jax.random.normal(k2, (4, 40, 48), dtype=jnp.float32)
    y2 = jax.block_until_ready(reduce_sum_dtype_float(x2, max_rows_per_step=8))
    ref2 = jnp.sum(x2.astype(jnp.float32))
    assert jnp.allclose(y2, ref2, rtol=1e-5, atol=1e-3), (y2, ref2)

    print("KERNEL_OK")
</pallas_src>

<mosaic_0001>
module attributes {stable_mosaic.version = 11 : i64} {
  func.func @_sum_kernel(%arg0: i32, %arg1: memref<8x512xf32, #tpu.memory_space<vmem>>, %arg2: memref<8x512xf32, #tpu.memory_space<vmem>>) attributes {dimension_semantics = [#tpu.dimension_semantics<arbitrary>], iteration_bounds = array<i64: 1>, scalar_prefetch = 0 : i64, scratch_operands = 0 : i64, tpu.core_type = #tpu.core_type<tc>, window_params = [{transform_indices = @transform_0, window_bounds = array<i64: 8, 512>}, {pipeline_mode = #tpu.pipeline_mode<synchronous>, transform_indices = @transform_1, window_bounds = array<i64: 8, 512>}]} {
    %c0_i32 = arith.constant 0 : i32
    %0 = arith.cmpi eq, %arg0, %c0_i32 : i32
    %1 = arith.extui %0 : i1 to i32
    %c0_i32_0 = arith.constant 0 : i32
    %2 = arith.cmpi ne, %1, %c0_i32_0 : i32
    scf.if %2 {
      %cst_6 = arith.constant 0.000000e+00 : f32
      %9 = vector.broadcast %cst_6 : f32 to vector<8x512xf32>
      %c0_7 = arith.constant 0 : index
      %c0_8 = arith.constant 0 : index
      %10 = vector.load %arg2[%c0_7, %c0_8] : memref<8x512xf32, #tpu.memory_space<vmem>>, vector<8x512xf32>
      tpu.vector_store %arg2[%c0_7, %c0_8], %9 {strides = array<i32>} : memref<8x512xf32, #tpu.memory_space<vmem>>, vector<8x512xf32>,
    } else {
    }
    %c0 = arith.constant 0 : index
    %c0_1 = arith.constant 0 : index
    %3 = vector.load %arg1[%c0, %c0_1] : memref<8x512xf32, #tpu.memory_space<vmem>>, vector<8x512xf32>
    %c0_2 = arith.constant 0 : index
    %c0_3 = arith.constant 0 : index
    %4 = vector.load %arg2[%c0_2, %c0_3] : memref<8x512xf32, #tpu.memory_space<vmem>>, vector<8x512xf32>
    %5 = vector.shape_cast %3 : vector<8x512xf32> to vector<1x8x512xf32>
    %cst = arith.constant dense<0.000000e+00> : vector<8x512xf32>
    %6 = vector.multi_reduction <add>, %5, %cst [0] : vector<1x8x512xf32> to vector<8x512xf32>
    %7 = arith.addf %4, %6 : vector<8x512xf32>
    %c0_4 = arith.constant 0 : index
    %c0_5 = arith.constant 0 : index
    %8 = vector.load %arg2[%c0_4, %c0_5] : memref<8x512xf32, #tpu.memory_space<vmem>>, vector<8x512xf32>
    tpu.vector_store %arg2[%c0_4, %c0_5], %7 {strides = array<i32>} : memref<8x512xf32, #tpu.memory_space<vmem>>, vector<8x512xf32>,
    return
  }
  func.func @transform_0(%arg0: i32) -> (i32, i32) {
    %c0_i32 = arith.constant 0 : i32
    %c0_i32_0 = arith.constant 0 : i32
    return %arg0, %c0_i32 : i32, i32
  }
  func.func @transform_1(%arg0: i32) -> (i32, i32) {
    %c0_i32 = arith.constant 0 : i32
    %c0_i32_0 = arith.constant 0 : i32
    %c0_i32_1 = arith.constant 0 : i32
    return %c0_i32, %c0_i32_0 : i32, i32
  }
}

</mosaic_0001>

<llo_original>
// kernel: tpu_custom_call.1
$region0: #{tpu_custom_call.1}
  #allocation0 [shape = 'u32[]', space=smem, size = 0x4, offset = 0x4, fixed_abs, tag = 'smem constant byte address 0x4 - core index']
  #allocation1 [shape = 'u32[72,128]{1,0:T(1,128)}', space=vmem, size = 0x9000, scoped, tag = 'internal scratch']
  %s0 = inlined_call_operand.hbm [shape: f32[8,512], index: 0, kind: input, shape index: {}]
  %s1 = inlined_call_operand.hbm [shape: f32[8,512], index: 1, kind: output, shape index: {}]
  %s2 = sld [smem:[#allocation0]]
  $region22: #{tpu_custom_call.1} parent=0
    _
  %s4 = ssub.s32 1, %s2
  %s5 = scalar_select 0, %s4, %s2
  $region1: #{tpu_custom_call.1} parent=0
    #allocation2 [shape = 'u8[16384]{0}', space=vmem, size = 0x4000, scoped, tag = 'input window, operand 0, single buffered']
    #allocation3 [shape = 's32[1]{0}', space=sflag, size = 0x4, scoped, tag = 'scoped memory for tpu_custom_call.1']
    #allocation4 [shape = 's32[1]{0}', space=sflag, size = 0x4, scoped, tag = 'scoped memory for tpu_custom_call.1']
    #allocation5 [shape = 'u8[16384]{0}', space=vmem, size = 0x4000, scoped, tag = 'output window, operand 0, single buffered']
    %6 = vsyncpa [#allocation3], 0
    %7 = vsyncpa [#allocation4], 0
    // Predicated region
    $region2: #{tpu_custom_call.1} parent=1 // pred_check
      _
    $region3: #{tpu_custom_call.1} parent=1 // pred_check_branch
      %9 = sbr.rel (0) target = $region5
    $region4: #{tpu_custom_call.1} parent=1 // pred_region
      %11 = vsyncadd [#allocation3], 0
      %s13 = sshll.u32 %s0, 4
      %s14 = int_to_ptr.hbm [resolvable:$true] %s13
      %s15 = sshll.u32 [#allocation2], 4
      %s16 = int_to_ptr.vmem [resolvable:$true] %s15
      %18 = dma.hbm_to_vmem [thread:$0]  %s14, 512, %s16, [#allocation3]
    $region5: #{tpu_custom_call.1} parent=1 // pred_fallthru
      _
    // Predicated region
    $region6: #{tpu_custom_call.1} parent=1 // pred_check
      _
    $region7: #{tpu_custom_call.1} parent=1 // pred_check_branch
      %20 = sbr.rel (0) target = $region9
    $region8: #{tpu_custom_call.1} parent=1 // pred_region
      %22 = dma.done [#allocation3], 512
    $region9: #{tpu_custom_call.1} parent=1 // pred_fallthru
      _
    %p23 = scmp.eq.s32.totalorder 0, 0
    // Predicated region
    $region10: #{tpu_custom_call.1} parent=1 // pred_check
      %p24 = pneg %p23
    $region11: #{tpu_custom_call.1} parent=1 // pred_check_branch
      %26 = sbr.rel (%p24) target = $region13
    $region12: #{tpu_custom_call.1} parent=1 // pred_region
      %27 = vst [vmem:[#allocation5] sm:$0xff] 0.0
      %28 = vst [vmem:[#allocation5 + $0x8] sm:$0xff] 0.0
      %29 = vst [vmem:[#allocation5 + $0x10] sm:$0xff] 0.0
      %30 = vst [vmem:[#allocation5 + $0x18] sm:$0xff] 0.0
    $region13: #{tpu_custom_call.1} parent=1 // pred_fallthru
      _
    %v31 = vld [vmem:[#allocation2] sm:$0xff]
    %v32 = vld [vmem:[#allocation2 + $0x8] sm:$0xff]
    %v33 = vld [vmem:[#allocation2 + $0x10] sm:$0xff]
    %v34 = vld [vmem:[#allocation2 + $0x18] sm:$0xff]
    %v35 = vld [vmem:[#allocation5] sm:$0xff]
    %v36 = vld [vmem:[#allocation5 + $0x8] sm:$0xff]
    %v37 = vld [vmem:[#allocation5 + $0x10] sm:$0xff]
    %v38 = vld [vmem:[#allocation5 + $0x18] sm:$0xff]
    %v39 = vadd.f32 %v31, 0.0
    %v40 = vadd.f32 %v32, 0.0
    %v41 = vadd.f32 %v33, 0.0
    %v42 = vadd.f32 %v34, 0.0
    %v43 = vadd.f32 %v35, %v39
    %v44 = vadd.f32 %v36, %v40
    %v45 = vadd.f32 %v37, %v41
    %v46 = vadd.f32 %v38, %v42
    %47 = vst [vmem:[#allocation5] sm:$0xff] %v43
    %48 = vst [vmem:[#allocation5 + $0x8] sm:$0xff] %v44
    %49 = vst [vmem:[#allocation5 + $0x10] sm:$0xff] %v45
    %50 = vst [vmem:[#allocation5 + $0x18] sm:$0xff] %v46
    // Predicated region
    $region14: #{tpu_custom_call.1} parent=1 // pred_check
      _
    $region15: #{tpu_custom_call.1} parent=1 // pred_check_branch
      %52 = sbr.rel (0) target = $region17
    $region16: #{tpu_custom_call.1} parent=1 // pred_region
      %54 = vsyncadd [#allocation4], 0
      %s56 = sshll.u32 [#allocation5], 4
      %s57 = int_to_ptr.vmem [resolvable:$true] %s56
      %s58 = sshll.u32 %s1, 4
      %s59 = int_to_ptr.hbm [resolvable:$true] %s58
      %61 = dma.vmem_to_hbm [thread:$0]  %s57, 512, %s59, [#allocation4]
    $region17: #{tpu_custom_call.1} parent=1 // pred_fallthru
      _
    // Predicated region
    $region18: #{tpu_custom_call.1} parent=1 // pred_check
      _
    $region19: #{tpu_custom_call.1} parent=1 // pred_check_branch
      %63 = sbr.rel (0) target = $region21
    $region20: #{tpu_custom_call.1} parent=1 // pred_region
      %65 = dma.done [#allocation4], 512
    $region21: #{tpu_custom_call.1} parent=1 // pred_fallthru
      _
    %66 = vsyncpa [#allocation3], 1
    %67 = vsyncpa [#allocation4], 1

</llo_original>
